<compile_context>
chip_gen: v7x
topology: tpu7x:2x2x1
jax: 0.10.0
libtpu: 0.0.40
codegen_flags: <defaults>
</compile_context>

<pallas_src>
import jax
import jax.numpy as jnp
from jax.experimental import pallas as pl
from jax.experimental.pallas import tpu as pltpu


# ---------------------------------------------------------------------------
# Kernels
# ---------------------------------------------------------------------------

def ffn_kernel_resident(x_ref, w1_ref, b1_ref, w2_ref, b2_ref, o_ref):
    """Single reduction step: weights VMEM-resident, no accumulator scratch."""
    # x_ref:  (tm, d_model)      w1_ref: (d_model, d_ff)   b1_ref: (1, d_ff)
    # w2_ref: (d_ff, d_model)    b2_ref: (1, d_model)      o_ref:  (tm, d_model)
    h = jnp.dot(x_ref[...], w1_ref[...], preferred_element_type=jnp.float32)
    h = jnp.maximum(h + b1_ref[...].astype(jnp.float32), 0.0)      # ReLU (f32)
    # TODO(synk): dropout is identity here (eval mode); training parity would
    # need pltpu.prng_seed / pltpu.prng_random_bits masking + 1/(1-p) scaling.
    out = jnp.dot(h.astype(w2_ref.dtype), w2_ref[...],
                  preferred_element_type=jnp.float32)
    o_ref[...] = (out + b2_ref[...].astype(jnp.float32)).astype(o_ref.dtype)


def ffn_kernel_chunked(x_ref, w1_ref, b1_ref, w2_ref, b2_ref, o_ref, acc_ref):
    """d_ff streamed in chunks; f32 accumulator seeded with b2 at k == 0."""
    k = pl.program_id(1)

    @pl.when(k == 0)
    def _init():
        # Seed with b2 so finalize is only a cast + store.
        acc_ref[...] = jnp.broadcast_to(
            b2_ref[...].astype(jnp.float32), acc_ref.shape)

    h = jnp.dot(x_ref[...], w1_ref[...], preferred_element_type=jnp.float32)
    h = jnp.maximum(h + b1_ref[...].astype(jnp.float32), 0.0)      # ReLU (f32)
    # TODO(synk): dropout identity here as well (see resident kernel).
    acc_ref[...] += jnp.dot(h.astype(w2_ref.dtype), w2_ref[...],
                            preferred_element_type=jnp.float32)

    @pl.when(k == pl.num_programs(1) - 1)
    def _finalize():
        o_ref[...] = acc_ref[...].astype(o_ref.dtype)


# ---------------------------------------------------------------------------
# Wrapper
# ---------------------------------------------------------------------------

def _vmem_capacity_bytes():
    try:
        return int(pltpu.get_tpu_info().vmem_capacity_bytes)
    except Exception:
        return 64 * 1024 * 1024          # conservative (v7x per-TC VMEM)


def _pick_row_tile(M, target):
    """Largest multiple of 16 dividing M that is <= target (else M itself)."""
    if M <= target:
        return M
    cand = (min(target, M) // 16) * 16
    while cand >= 16:
        if M % cand == 0:
            return cand
        cand -= 16
    return M


def positionwise_feed_forward(x, w1t, b1, w2t, b2, *, tm=None, tf=None,
                              cast_to_bf16=True):
    """y = relu(x @ w1t + b1) @ w2t + b2  (dropout = identity / eval mode).

    x:   [B, S, d_model]
    w1t: [d_model, d_ff]   b1: [d_ff]
    w2t: [d_ff, d_model]   b2: [d_model]
    (weights pre-transposed relative to PyTorch's [out, in] storage).
    """
    B, S, d_model = x.shape
    d_ff = w1t.shape[1]
    M = B * S
    out_dtype = x.dtype

    # --- MXU operands: bf16 with f32 accumulation. ---------------------------
    if cast_to_bf16 and x.dtype == jnp.float32:
        xq = x.astype(jnp.bfloat16)
        w1q = w1t.astype(jnp.bfloat16)
        w2q = w2t.astype(jnp.bfloat16)
    else:
        xq, w1q, w2q = x, w1t, w2t
    act_bytes = jnp.dtype(xq.dtype).itemsize
    w_bytes = jnp.dtype(w1q.dtype).itemsize
    out_bytes = jnp.dtype(out_dtype).itemsize
    b_bytes = jnp.dtype(b1.dtype).itemsize

    # --- Gen-aware VMEM budget (v7x: 64 MiB / TC; v5e/v6e: 128 MiB). ---------
    vmem_cap = _vmem_capacity_bytes()
    vmem_budget = int(vmem_cap * 3 // 4)

    # --- Row tile. ------------------------------------------------------------
    if tm is None:
        tm = _pick_row_tile(M, target=512)
    tm = min(tm, M)
    assert M % tm == 0, "row count M = B*S must be divisible by the row tile tm"
    assert tm % 16 == 0 or tm == M, \
        "tm must be a multiple of 16 (bf16 sublane packing) or equal to M"

    # --- VMEM estimators (x2 = default double-buffering per BlockSpec). ------
    io_vmem = 2 * tm * d_model * (act_bytes + out_bytes)

    def resident_vmem():
        return (2 * (d_model * d_ff + d_ff * d_model) * w_bytes   # w1 + w2
                + io_vmem
                + 2 * (d_ff + d_model) * b_bytes                  # biases
                + tm * d_ff * 4)                                  # f32 h

    def chunked_vmem(tf_):
        return (2 * (d_model * tf_ + tf_ * d_model) * w_bytes     # weight chunks
                + io_vmem
                + 2 * (tf_ + d_model) * b_bytes                   # biases
                + tm * tf_ * 4                                    # f32 h chunk
                + tm * d_model * 4)                               # f32 accumulator

    # --- d_ff chunk: weight-resident fast path when everything fits. ---------
    if tf is None:
        if resident_vmem() <= vmem_budget:
            tf = d_ff
        else:
            tf = 128
            cand = (min(d_ff, 2048) // 128) * 128
            while cand >= 128:
                if d_ff % cand == 0 and chunked_vmem(cand) <= vmem_budget:
                    tf = cand
                    break
                cand -= 128
    tf = min(tf, d_ff)
    assert d_ff % tf == 0, "d_ff must be divisible by the d_ff chunk tf"
    assert tf % 128 == 0 or tf == d_ff, "tf must be a multiple of 128 (or == d_ff)"

    resident = (tf == d_ff)

    x2d = xq.reshape(M, d_model)
    b1r = b1.reshape(1, d_ff)
    b2r = b2.reshape(1, d_model)

    # --- Cost estimate: count weight re-streaming in the chunked path. -------
    weight_passes = 1 if resident else (M // tm)
    cost = pl.CostEstimate(
        flops=4 * M * d_model * d_ff,                 # two matmuls
        transcendentals=0,
        bytes_accessed=int(M * d_model * act_bytes
                           + weight_passes * 2 * d_model * d_ff * w_bytes
                           + (d_ff + d_model) * b_bytes
                           + M * d_model * out_bytes))

    vmem_est = resident_vmem() if resident else chunked_vmem(tf)
    vmem_limit = int(min(max(2 * vmem_est, 32 * 1024 * 1024), vmem_budget))
    vmem_limit = int(max(vmem_limit, vmem_est + (1 << 20)))   # never < estimate

    if resident:
        out2d = pl.pallas_call(
            ffn_kernel_resident,
            out_shape=jax.ShapeDtypeStruct((M, d_model), out_dtype),
            grid_spec=pltpu.PrefetchScalarGridSpec(
                num_scalar_prefetch=0,
                grid=(M // tm,),
                in_specs=[
                    pl.BlockSpec((tm, d_model), lambda i: (i, 0)),    # x tile
                    pl.BlockSpec((d_model, d_ff), lambda i: (0, 0)),  # w1 resident
                    pl.BlockSpec((1, d_ff), lambda i: (0, 0)),        # b1
                    pl.BlockSpec((d_ff, d_model), lambda i: (0, 0)),  # w2 resident
                    pl.BlockSpec((1, d_model), lambda i: (0, 0)),     # b2
                ],
                out_specs=pl.BlockSpec((tm, d_model), lambda i: (i, 0)),
            ),
            compiler_params=pltpu.CompilerParams(
                dimension_semantics=("parallel",),
                vmem_limit_bytes=vmem_limit),
            cost_estimate=cost,
        )(x2d, w1q, b1r, w2q, b2r)
    else:
        out2d = pl.pallas_call(
            ffn_kernel_chunked,
            out_shape=jax.ShapeDtypeStruct((M, d_model), out_dtype),
            grid_spec=pltpu.PrefetchScalarGridSpec(
                num_scalar_prefetch=0,
                grid=(M // tm, d_ff // tf),
                in_specs=[
                    pl.BlockSpec((tm, d_model), lambda i, k: (i, 0)),   # x tile
                    pl.BlockSpec((d_model, tf), lambda i, k: (0, k)),   # w1 chunk
                    pl.BlockSpec((1, tf), lambda i, k: (0, k)),         # b1 chunk
                    pl.BlockSpec((tf, d_model), lambda i, k: (k, 0)),   # w2 chunk
                    pl.BlockSpec((1, d_model), lambda i, k: (0, 0)),    # b2
                ],
                out_specs=pl.BlockSpec((tm, d_model), lambda i, k: (i, 0)),
                scratch_shapes=[pltpu.VMEM((tm, d_model), jnp.float32)],
            ),
            compiler_params=pltpu.CompilerParams(
                dimension_semantics=("parallel", "arbitrary"),
                vmem_limit_bytes=vmem_limit),
            cost_estimate=cost,
        )(x2d, w1q, b1r, w2q, b2r)

    return out2d.reshape(B, S, d_model)


# ---------------------------------------------------------------------------
# Self-test
# ---------------------------------------------------------------------------

if __name__ == "__main__":
    # Small shapes consistent with the module's forward.
    B, S, d_model, d_ff = 2, 16, 64, 256

    key = jax.random.PRNGKey(0)
    kx, kw1, kb1, kw2, kb2 = jax.random.split(key, 5)

    x = jax.random.normal(kx, (B, S, d_model), dtype=jnp.float32)

    # Deterministic "Linear" params (PyTorch stores [out, in]; kernel uses
    # transposed [in, out]).
    bound1 = 1.0 / (d_model ** 0.5)
    w1t = jax.random.uniform(kw1, (d_model, d_ff), jnp.float32, -bound1, bound1)
    b1 = jax.random.uniform(kb1, (d_ff,), jnp.float32, -bound1, bound1)
    bound2 = 1.0 / (d_ff ** 0.5)
    w2t = jax.random.uniform(kw2, (d_ff, d_model), jnp.float32, -bound2, bound2)
    b2 = jax.random.uniform(kb2, (d_model,), jnp.float32, -bound2, bound2)

    ref = jnp.maximum(x @ w1t + b1, 0.0) @ w2t + b2

    # 1) Default: weight-resident fast path, bf16 MXU operands.
    out = jax.block_until_ready(positionwise_feed_forward(x, w1t, b1, w2t, b2))
    assert out.shape == (B, S, d_model)
    assert jnp.allclose(out, ref, atol=3e-2, rtol=3e-2), \
        float(jnp.max(jnp.abs(out - ref)))

    # 2) Exact f32 path (no bf16 cast), resident weights: tight tolerance.
    out_f32 = jax.block_until_ready(
        positionwise_feed_forward(x, w1t, b1, w2t, b2, cast_to_bf16=False))
    assert jnp.allclose(out_f32, ref, atol=1e-4, rtol=1e-4)

    # 3) Chunked reduction path (2 k steps, 2 row tiles), exact f32.
    out_chunk = jax.block_until_ready(
        positionwise_feed_forward(x, w1t, b1, w2t, b2,
                                  tm=16, tf=128, cast_to_bf16=False))
    assert jnp.allclose(out_chunk, ref, atol=1e-4, rtol=1e-4)

    # 4) Chunked reduction path with bf16 MXU operands.
    out_chunk_bf16 = jax.block_until_ready(
        positionwise_feed_forward(x, w1t, b1, w2t, b2, tm=16, tf=128))
    assert jnp.allclose(out_chunk_bf16, ref, atol=3e-2, rtol=3e-2), \
        float(jnp.max(jnp.abs(out_chunk_bf16 - ref)))

    print("KERNEL_OK")
</pallas_src>

<mosaic_0001>
module attributes {stable_mosaic.version = 11 : i64} {
  func.func @ffn_kernel_resident(%arg0: i32, %arg1: memref<32x64xbf16, #tpu.memory_space<vmem>>, %arg2: memref<64x256xbf16, #tpu.memory_space<vmem>>, %arg3: memref<1x256xf32, #tpu.memory_space<vmem>>, %arg4: memref<256x64xbf16, #tpu.memory_space<vmem>>, %arg5: memref<1x64xf32, #tpu.memory_space<vmem>>, %arg6: memref<32x64xf32, #tpu.memory_space<vmem>>) attributes {dimension_semantics = [#tpu.dimension_semantics<parallel>], iteration_bounds = array<i64: 1>, scalar_prefetch = 0 : i64, scratch_operands = 0 : i64, tpu.core_type = #tpu.core_type<tc>, window_params = [{transform_indices = @transform_0, window_bounds = array<i64: 32, 64>}, {pipeline_mode = #tpu.pipeline_mode<synchronous>, transform_indices = @transform_1, window_bounds = array<i64: 64, 256>}, {pipeline_mode = #tpu.pipeline_mode<synchronous>, transform_indices = @transform_2, window_bounds = array<i64: 1, 256>}, {pipeline_mode = #tpu.pipeline_mode<synchronous>, transform_indices = @transform_3, window_bounds = array<i64: 256, 64>}, {pipeline_mode = #tpu.pipeline_mode<synchronous>, transform_indices = @transform_4, window_bounds = array<i64: 1, 64>}, {transform_indices = @transform_5, window_bounds = array<i64: 32, 64>}]} {
    %c0 = arith.constant 0 : index
    %c0_0 = arith.constant 0 : index
    %0 = vector.load %arg1[%c0, %c0_0] : memref<32x64xbf16, #tpu.memory_space<vmem>>, vector<32x64xbf16>
    %c0_1 = arith.constant 0 : index
    %c0_2 = arith.constant 0 : index
    %1 = vector.load %arg2[%c0_1, %c0_2] : memref<64x256xbf16, #tpu.memory_space<vmem>>, vector<64x256xbf16>
    %cst = arith.constant dense<0.000000e+00> : vector<32x256xf32>
    %2 = tpu.matmul %0, %1, %cst {dimension_numbers = #tpu.dot_dimension_numbers<[1], [0], [0], [1], [0, 0, 1, 1], [], []>} : vector<32x64xbf16>, vector<64x256xbf16>, vector<32x256xf32> -> vector<32x256xf32>
    %c0_3 = arith.constant 0 : index
    %c0_4 = arith.constant 0 : index
    %3 = vector.load %arg3[%c0_3, %c0_4] : memref<1x256xf32, #tpu.memory_space<vmem>>, vector<1x256xf32>
    %4 = vector.broadcast %3 : vector<1x256xf32> to vector<32x256xf32>
    %5 = arith.addf %2, %4 : vector<32x256xf32>
    %cst_5 = arith.constant 0.000000e+00 : f32
    %6 = vector.broadcast %cst_5 : f32 to vector<32x256xf32>
    %7 = arith.maximumf %5, %6 : vector<32x256xf32>
    %8 = arith.truncf %7 : vector<32x256xf32> to vector<32x256xbf16>
    %c0_6 = arith.constant 0 : index
    %c0_7 = arith.constant 0 : index
    %9 = vector.load %arg4[%c0_6, %c0_7] : memref<256x64xbf16, #tpu.memory_space<vmem>>, vector<256x64xbf16>
    %cst_8 = arith.constant dense<0.000000e+00> : vector<32x64xf32>
    %10 = tpu.matmul %8, %9, %cst_8 {dimension_numbers = #tpu.dot_dimension_numbers<[1], [0], [0], [1], [0, 0, 1, 1], [], []>} : vector<32x256xbf16>, vector<256x64xbf16>, vector<32x64xf32> -> vector<32x64xf32>
    %c0_9 = arith.constant 0 : index
    %c0_10 = arith.constant 0 : index
    %11 = vector.load %arg5[%c0_9, %c0_10] : memref<1x64xf32, #tpu.memory_space<vmem>>, vector<1x64xf32>
    %12 = vector.broadcast %11 : vector<1x64xf32> to vector<32x64xf32>
    %13 = arith.addf %10, %12 : vector<32x64xf32>
    %c0_11 = arith.constant 0 : index
    %c0_12 = arith.constant 0 : index
    %14 = vector.load %arg6[%c0_11, %c0_12] : memref<32x64xf32, #tpu.memory_space<vmem>>, vector<32x64xf32>
    tpu.vector_store %arg6[%c0_11, %c0_12], %13 {strides = array<i32>} : memref<32x64xf32, #tpu.memory_space<vmem>>, vector<32x64xf32>,
    return
  }
  func.func @transform_0(%arg0: i32) -> (i32, i32) {
    %c0_i32 = arith.constant 0 : i32
    %c0_i32_0 = arith.constant 0 : i32
    return %arg0, %c0_i32 : i32, i32
  }
  func.func @transform_1(%arg0: i32) -> (i32, i32) {
    %c0_i32 = arith.constant 0 : i32
    %c0_i32_0 = arith.constant 0 : i32
    %c0_i32_1 = arith.constant 0 : i32
    return %c0_i32, %c0_i32_0 : i32, i32
  }
  func.func @transform_2(%arg0: i32) -> (i32, i32) {
    %c0_i32 = arith.constant 0 : i32
    %c0_i32_0 = arith.constant 0 : i32
    %c0_i32_1 = arith.constant 0 : i32
    return %c0_i32, %c0_i32_0 : i32, i32
  }
  func.func @transform_3(%arg0: i32) -> (i32, i32) {
    %c0_i32 = arith.constant 0 : i32
    %c0_i32_0 = arith.constant 0 : i32
    %c0_i32_1 = arith.constant 0 : i32
    return %c0_i32, %c0_i32_0 : i32, i32
  }
  func.func @transform_4(%arg0: i32) -> (i32, i32) {
    %c0_i32 = arith.constant 0 : i32
    %c0_i32_0 = arith.constant 0 : i32
    %c0_i32_1 = arith.constant 0 : i32
    return %c0_i32, %c0_i32_0 : i32, i32
  }
  func.func @transform_5(%arg0: i32) -> (i32, i32) {
    %c0_i32 = arith.constant 0 : i32
    %c0_i32_0 = arith.constant 0 : i32
    return %arg0, %c0_i32 : i32, i32
  }
}

</mosaic_0001>

<llo_original>
// kernel: tpu_custom_call.1
$region0: #{tpu_custom_call.1}
  #allocation0 [shape = 'u32[]', space=smem, size = 0x4, offset = 0x4, fixed_abs, tag = 'smem constant byte address 0x4 - core index']
  #allocation1 [shape = 'u32[144,128]{1,0:T(1,128)}', space=vmem, size = 0x12000, scoped, tag = 'internal scratch']
  %s0 = inlined_call_operand.vmem [shape: bf16[32,64], index: 0, kind: input, shape index: {}]
  %s1 = inlined_call_operand.vmem [shape: bf16[64,256], index: 1, kind: input, shape index: {}]
  %s2 = inlined_call_operand.vmem [shape: f32[1,256], index: 2, kind: input, shape index: {}]
  %s3 = inlined_call_operand.vmem [shape: bf16[256,64], index: 3, kind: input, shape index: {}]
  %s4 = inlined_call_operand.vmem [shape: f32[1,64], index: 4, kind: input, shape index: {}]
  %s5 = inlined_call_operand.hbm [shape: f32[32,64], index: 5, kind: output, shape index: {}]
  %s6 = sld [smem:[#allocation0]]
  $region30: #{tpu_custom_call.1} parent=0
    _
  %s8 = ssub.s32 1, %s6
  %s9 = scalar_select 0, %s8, %s6
  $region1: #{tpu_custom_call.1} parent=0
    #allocation2 [shape = 'u8[16384]{0}', space=vmem, size = 0x4000, scoped, tag = 'output window, operand 0, single buffered']
    #allocation3 [shape = 's32[1]{0}', space=sflag, size = 0x4, scoped, tag = 'scoped memory for tpu_custom_call.1']
    %10 = vsyncpa [#allocation3], 0
    // Predicated region
    $region2: #{tpu_custom_call.1} parent=1 // pred_check
      _
    $region3: #{tpu_custom_call.1} parent=1 // pred_check_branch
      %12 = sbr.rel (0) target = $region5
    $region4: #{tpu_custom_call.1} parent=1 // pred_region
      _
    $region5: #{tpu_custom_call.1} parent=1 // pred_fallthru
      _
    // Predicated region
    $region6: #{tpu_custom_call.1} parent=1 // pred_check
      _
    $region7: #{tpu_custom_call.1} parent=1 // pred_check_branch
      %14 = sbr.rel (0) target = $region9
    $region8: #{tpu_custom_call.1} parent=1 // pred_region
      _
    $region9: #{tpu_custom_call.1} parent=1 // pred_fallthru
      _
    // Predicated region
    $region10: #{tpu_custom_call.1} parent=1 // pred_check
      _
    $region11: #{tpu_custom_call.1} parent=1 // pred_check_branch
      %16 = sbr.rel (0) target = $region13
    $region12: #{tpu_custom_call.1} parent=1 // pred_region
      _
    $region13: #{tpu_custom_call.1} parent=1 // pred_fallthru
      _
    // Predicated region
    $region14: #{tpu_custom_call.1} parent=1 // pred_check
      _
    $region15: #{tpu_custom_call.1} parent=1 // pred_check_branch
      %18 = sbr.rel (0) target = $region17
    $region16: #{tpu_custom_call.1} parent=1 // pred_region
      _
    $region17: #{tpu_custom_call.1} parent=1 // pred_fallthru
      _
    // Predicated region
    $region18: #{tpu_custom_call.1} parent=1 // pred_check
      _
    $region19: #{tpu_custom_call.1} parent=1 // pred_check_branch
      %20 = sbr.rel (0) target = $region21
    $region20: #{tpu_custom_call.1} parent=1 // pred_region
      _
    $region21: #{tpu_custom_call.1} parent=1 // pred_fallthru
      _
    %v22 = vld [vmem:[%s0] sm:$0xf]
    %v23 = vld [vmem:[%s0 + $0x4] sm:$0xf]
    %v24 = vld [vmem:[%s0 + $0x8] sm:$0xf]
    %v25 = vld [vmem:[%s0 + $0xc] sm:$0xf]
    %v26 = vld [vmem:[%s1] sm:$0xff]
    %v27 = vld [vmem:[%s1 + $0x8] sm:$0xff]
    %v28 = vld [vmem:[%s1 + $0x10] sm:$0xff]
    %v29 = vld [vmem:[%s1 + $0x18] sm:$0xff]
    %v30 = vld [vmem:[%s1 + $0x20] sm:$0xff]
    %v31 = vld [vmem:[%s1 + $0x28] sm:$0xff]
    %v32 = vld [vmem:[%s1 + $0x30] sm:$0xff]
    %v33 = vld [vmem:[%s1 + $0x38] sm:$0xff]
    %v34 = vld [vmem:[%s2] sm:$0x3]
    %v36 = vlaneseq
    %v37 = vshrl.u32 %v36, 7
    %v38 = vsub.s32 0, %v37
    %v39 = vrot.slane %v34, %v38
    %v40 = vlaneseq
    %v41 = vshrl.u32 %v40, 7
    %v42 = vsub.s32 1, %v41
    %v43 = vrot.slane %v34, %v42
    %v50 = vunpack.c.l.b16 %v22
    %v51 = vunpack.c.l.b16 %v23
    %v52 = vunpack.c.l.b16 %v24
    %v53 = vunpack.c.l.b16 %v25
    %v54 = vpack.c.b16 %v51, %v50
    %v55 = vpack.c.b16 %v53, %v52
    %v64 = vunpack.c.l.b16 %v26
    %v65 = vunpack.c.h.b16 %v26
    %v66 = vunpack.c.l.b16 %v27
    %v67 = vunpack.c.h.b16 %v27
    %v68 = vunpack.c.l.b16 %v28
    %v69 = vunpack.c.h.b16 %v28
    %v70 = vunpack.c.l.b16 %v29
    %v71 = vunpack.c.h.b16 %v29
    %v72 = vunpack.c.l.b16 %v30
    %v73 = vunpack.c.h.b16 %v30
    %v74 = vunpack.c.l.b16 %v31
    %v75 = vunpack.c.h.b16 %v31
    %v76 = vunpack.c.l.b16 %v32
    %v77 = vunpack.c.h.b16 %v32
    %v78 = vunpack.c.l.b16 %v33
    %v79 = vunpack.c.h.b16 %v33
    %v80 = vpack.c.b16 %v66, %v64
    %v81 = vpack.c.b16 %v67, %v65
    %v82 = vpack.c.b16 %v70, %v68
    %v83 = vpack.c.b16 %v71, %v69
    %v84 = vpack.c.b16 %v74, %v72
    %v85 = vpack.c.b16 %v75, %v73
    %v86 = vpack.c.b16 %v78, %v76
    %v87 = vpack.c.b16 %v79, %v77
    %vm96 = vcmask 523264
    %v98 = vsel %vm96, %v54, 0
    %v101 = vsel %vm96, %v55, 0
    %103 = vmatprep.subr.bf16.mxu0 %v81
    %104 = vmatpush1.bf16.msra.mxu0 %v80
    %105 = vmatprep.subr.bf16.mxu0 %v83
    %106 = vmatpush1.bf16.msra.mxu0 %v82
    %107 = vmatprep.subr.bf16.mxu0 %v85
    %108 = vmatpush1.bf16.msra.mxu0 %v84
    %109 = vmatprep.subr.bf16.mxu0 %v87
    %110 = vmatpush1.bf16.msra.mxu0 %v86
    %111 = vmatprep.subr.bf16.mxu0 0
    %112 = vmatpush1.bf16.msra.mxu0 0
    %113 = vmatprep.subr.bf16.mxu0 0
    %114 = vmatpush1.bf16.msra.mxu0 0
    %115 = vmatprep.subr.bf16.mxu0 0
    %116 = vmatpush1.bf16.msra.mxu0 0
    %117 = vmatprep.subr.bf16.mxu0 0
    %118 = vmatpush1.bf16.msra.mxu0 0
    %119 = vmatprep.subr.bf16.mxu0 0
    %120 = vmatpush1.bf16.msra.mxu0 0
    %121 = vmatprep.subr.bf16.mxu0 0
    %122 = vmatpush1.bf16.msra.mxu0 0
    %123 = vmatprep.subr.bf16.mxu0 0
    %124 = vmatpush1.bf16.msra.mxu0 0
    %125 = vmatprep.subr.bf16.mxu0 0
    %126 = vmatpush1.bf16.msra.mxu0 0
    %127 = vmatprep.subr.bf16.mxu0 0
    %128 = vmatpush1.bf16.msra.mxu0 0
    %129 = vmatprep.subr.bf16.mxu0 0
    %130 = vmatpush1.bf16.msra.mxu0 0
    %131 = vmatprep.subr.bf16.mxu0 0
    %132 = vmatpush1.bf16.msra.mxu0 0
    %133 = vmatprep.subr.bf16.mxu0 0
    %134 = vmatpush1.bf16.msra.mxu0 0
    %135 = vmatprep.mubr.bf16.mxu0 0
    %136 = vmatmul.mubr.bf16.gmra.mrb[0].mxu0 %v98
    %v137 = vpop.f32.mrb[0].mxu0
    %v138 = vadd.f32 %v39, %v137
    %v139 = vpop.f32.mrb[0].mxu0
    %v140 = vadd.f32 %v43, %v139
    %v141 = vpop.f32.mrb[0].mxu0
    %v142 = vadd.f32 %v39, %v141
    %v143 = vpop.f32.mrb[0].mxu0
    %v144 = vadd.f32 %v43, %v143
    %145 = vmatprep.mubr.bf16.mxu0 0
    %146 = vmatmul.mubr.bf16.gmra.mrb[0].mxu0 %v101
    %v147 = vpop.f32.mrb[0].mxu0
    %v148 = vadd.f32 %v39, %v147
    %v149 = vpop.f32.mrb[0].mxu0
    %v150 = vadd.f32 %v43, %v149
    %v151 = vpop.f32.mrb[0].mxu0
    %v152 = vadd.f32 %v39, %v151
    %v153 = vpop.f32.mrb[0].mxu0
    %v154 = vadd.f32 %v43, %v153
    %155 = vdwg.mxu0
    %v156 = vmax.f32 %v138, 0.0
    %v157 = vmax.f32 %v140, 0.0
    %v158 = vmax.f32 %v142, 0.0
    %v159 = vmax.f32 %v144, 0.0
    %v160 = vmax.f32 %v148, 0.0
    %v161 = vmax.f32 %v150, 0.0
    %v162 = vmax.f32 %v152, 0.0
    %v163 = vmax.f32 %v154, 0.0
    %v164 = vpack.c.bf16 %v158, %v156
    %v165 = vpack.c.bf16 %v159, %v157
    %v166 = vpack.c.bf16 %v162, %v160
    %v167 = vpack.c.bf16 %v163, %v161
    %v168 = vld [vmem:[%s3] sm:$0xf]
    %v169 = vld [vmem:[%s3 + $0x4] sm:$0xf]
    %v170 = vld [vmem:[%s3 + $0x8] sm:$0xf]
    %v171 = vld [vmem:[%s3 + $0xc] sm:$0xf]
    %v172 = vld [vmem:[%s3 + $0x10] sm:$0xf]
    %v173 = vld [vmem:[%s3 + $0x14] sm:$0xf]
    %v174 = vld [vmem:[%s3 + $0x18] sm:$0xf]
    %v175 = vld [vmem:[%s3 + $0x1c] sm:$0xf]
    %v176 = vld [vmem:[%s3 + $0x20] sm:$0xf]
    %v177 = vld [vmem:[%s3 + $0x24] sm:$0xf]
    %v178 = vld [vmem:[%s3 + $0x28] sm:$0xf]
    %v179 = vld [vmem:[%s3 + $0x2c] sm:$0xf]
    %v180 = vld [vmem:[%s3 + $0x30] sm:$0xf]
    %v181 = vld [vmem:[%s3 + $0x34] sm:$0xf]
    %v182 = vld [vmem:[%s3 + $0x38] sm:$0xf]
    %v183 = vld [vmem:[%s3 + $0x3c] sm:$0xf]
    %v184 = vld [vmem:[%s3 + $0x40] sm:$0xf]
    %v185 = vld [vmem:[%s3 + $0x44] sm:$0xf]
    %v186 = vld [vmem:[%s3 + $0x48] sm:$0xf]
    %v187 = vld [vmem:[%s3 + $0x4c] sm:$0xf]
    %v188 = vld [vmem:[%s3 + $0x50] sm:$0xf]
    %v189 = vld [vmem:[%s3 + $0x54] sm:$0xf]
    %v190 = vld [vmem:[%s3 + $0x58] sm:$0xf]
    %v191 = vld [vmem:[%s3 + $0x5c] sm:$0xf]
    %v192 = vld [vmem:[%s3 + $0x60] sm:$0xf]
    %v193 = vld [vmem:[%s3 + $0x64] sm:$0xf]
    %v194 = vld [vmem:[%s3 + $0x68] sm:$0xf]
    %v195 = vld [vmem:[%s3 + $0x6c] sm:$0xf]
    %v196 = vld [vmem:[%s3 + $0x70] sm:$0xf]
    %v197 = vld [vmem:[%s3 + $0x74] sm:$0xf]
    %v198 = vld [vmem:[%s3 + $0x78] sm:$0xf]
    %v199 = vld [vmem:[%s3 + $0x7c] sm:$0xf]
    %v200 = vld [vmem:[%s4] sm:$0x1]
    %v202 = vlaneseq
    %v203 = vshrl.u32 %v202, 7
    %v204 = vsub.s32 0, %v203
    %v205 = vrot.slane %v200, %v204
    %v239 = vunpack.c.l.b16 %v168
    %v240 = vunpack.c.l.b16 %v169
    %v241 = vunpack.c.l.b16 %v170
    %v242 = vunpack.c.l.b16 %v171
    %v243 = vunpack.c.l.b16 %v172
    %v244 = vunpack.c.l.b16 %v173
    %v245 = vunpack.c.l.b16 %v174
    %v246 = vunpack.c.l.b16 %v175
    %v247 = vunpack.c.l.b16 %v176
    %v248 = vunpack.c.l.b16 %v177
    %v249 = vunpack.c.l.b16 %v178
    %v250 = vunpack.c.l.b16 %v179
    %v251 = vunpack.c.l.b16 %v180
    %v252 = vunpack.c.l.b16 %v181
    %v253 = vunpack.c.l.b16 %v182
    %v254 = vunpack.c.l.b16 %v183
    %v255 = vunpack.c.l.b16 %v184
    %v256 = vunpack.c.l.b16 %v185
    %v257 = vunpack.c.l.b16 %v186
    %v258 = vunpack.c.l.b16 %v187
    %v259 = vunpack.c.l.b16 %v188
    %v260 = vunpack.c.l.b16 %v189
    %v261 = vunpack.c.l.b16 %v190
    %v262 = vunpack.c.l.b16 %v191
    %v263 = vunpack.c.l.b16 %v192
    %v264 = vunpack.c.l.b16 %v193
    %v265 = vunpack.c.l.b16 %v194
    %v266 = vunpack.c.l.b16 %v195
    %v267 = vunpack.c.l.b16 %v196
    %v268 = vunpack.c.l.b16 %v197
    %v269 = vunpack.c.l.b16 %v198
    %v270 = vunpack.c.l.b16 %v199
    %v271 = vpack.c.b16 %v240, %v239
    %v272 = vpack.c.b16 %v242, %v241
    %v273 = vpack.c.b16 %v244, %v243
    %v274 = vpack.c.b16 %v246, %v245
    %v275 = vpack.c.b16 %v248, %v247
    %v276 = vpack.c.b16 %v250, %v249
    %v277 = vpack.c.b16 %v252, %v251
    %v278 = vpack.c.b16 %v254, %v253
    %v279 = vpack.c.b16 %v256, %v255
    %v280 = vpack.c.b16 %v258, %v257
    %v281 = vpack.c.b16 %v260, %v259
    %v282 = vpack.c.b16 %v262, %v261
    %v283 = vpack.c.b16 %v264, %v263
    %v284 = vpack.c.b16 %v266, %v265
    %v285 = vpack.c.b16 %v268, %v267
    %v286 = vpack.c.b16 %v270, %v269
    %303 = vmatprep.subr.bf16.mxu0 0
    %304 = vmatpush1.bf16.msra.mxu0 %v271
    %305 = vmatprep.subr.bf16.mxu0 0
    %306 = vmatpush1.bf16.msra.mxu0 %v272
    %307 = vmatprep.subr.bf16.mxu0 0
    %308 = vmatpush1.bf16.msra.mxu0 %v273
    %309 = vmatprep.subr.bf16.mxu0 0
    %310 = vmatpush1.bf16.msra.mxu0 %v274
    %311 = vmatprep.subr.bf16.mxu0 0
    %312 = vmatpush1.bf16.msra.mxu0 %v275
    %313 = vmatprep.subr.bf16.mxu0 0
    %314 = vmatpush1.bf16.msra.mxu0 %v276
    %315 = vmatprep.subr.bf16.mxu0 0
    %316 = vmatpush1.bf16.msra.mxu0 %v277
    %317 = vmatprep.subr.bf16.mxu0 0
    %318 = vmatpush1.bf16.msra.mxu0 %v278
    %319 = vmatprep.subr.bf16.mxu0 0
    %320 = vmatpush1.bf16.msra.mxu0 %v279
    %321 = vmatprep.subr.bf16.mxu0 0
    %322 = vmatpush1.bf16.msra.mxu0 %v280
    %323 = vmatprep.subr.bf16.mxu0 0
    %324 = vmatpush1.bf16.msra.mxu0 %v281
    %325 = vmatprep.subr.bf16.mxu0 0
    %326 = vmatpush1.bf16.msra.mxu0 %v282
    %327 = vmatprep.subr.bf16.mxu0 0
    %328 = vmatpush1.bf16.msra.mxu0 %v283
    %329 = vmatprep.subr.bf16.mxu0 0
    %330 = vmatpush1.bf16.msra.mxu0 %v284
    %331 = vmatprep.subr.bf16.mxu0 0
    %332 = vmatpush1.bf16.msra.mxu0 %v285
    %333 = vmatprep.subr.bf16.mxu0 0
    %334 = vmatpush1.bf16.msra.mxu0 %v286
    %335 = vmatprep.mubr.bf16.mxu0 %v165
    %336 = vmatmul.mubr.bf16.gmra.mrb[0].mxu0 %v164
    %v337 = vpop.f32.mrb[0].mxu0
    %v338 = vadd.f32 %v205, %v337
    %v339 = vpop.f32.mrb[0].mxu0
    %v340 = vpop.f32.mrb[0].mxu0
    %v341 = vadd.f32 %v205, %v340
    %v342 = vpop.f32.mrb[0].mxu0
    %343 = vmatprep.mubr.bf16.mxu0 %v167
    %344 = vmatmul.mubr.bf16.gmra.mrb[0].mxu0 %v166
    %v345 = vpop.f32.mrb[0].mxu0
    %v346 = vadd.f32 %v205, %v345
    %v347 = vpop.f32.mrb[0].mxu0
    %v348 = vpop.f32.mrb[0].mxu0
    %v349 = vadd.f32 %v205, %v348
    %v350 = vpop.f32.mrb[0].mxu0
    %351 = vdwg.mxu0
    %352 = vst.msk [vmem:[#allocation2] sm:$0xff] %vm96, %v338
    %353 = vst.msk [vmem:[#allocation2 + $0x8] sm:$0xff] %vm96, %v341
    %354 = vst.msk [vmem:[#allocation2 + $0x10] sm:$0xff] %vm96, %v346
    %355 = vst.msk [vmem:[#allocation2 + $0x18] sm:$0xff] %vm96, %v349
    // Predicated region
    $region22: #{tpu_custom_call.1} parent=1 // pred_check
      _
    $region23: #{tpu_custom_call.1} parent=1 // pred_check_branch
      %357 = sbr.rel (0) target = $region25
    $region24: #{tpu_custom_call.1} parent=1 // pred_region
      %s359 = ssub.s32 512, 512
      %360 = vsyncadd [#allocation3], %s359
      %s361 = sshll.u32 [#allocation2], 4
      %s362 = int_to_ptr.vmem [resolvable:$true] %s361
      %367 = dma.vmem_to_hbm [thread:$0]  %s362, 512, %s5, [#allocation3], 128, 128, 8
    $region25: #{tpu_custom_call.1} parent=1 // pred_fallthru
      _
    // Predicated region
    $region26: #{tpu_custom_call.1} parent=1 // pred_check
      _
    $region27: #{tpu_custom_call.1} parent=1 // pred_check_branch
      %369 = sbr.rel (0) target = $region29
    $region28: #{tpu_custom_call.1} parent=1 // pred_region
      %370 = dma.done [#allocation3], 512
    $region29: #{tpu_custom_call.1} parent=1 // pred_fallthru
      _
    %371 = vsyncpa [#allocation3], 1

</llo_original>
